<compile_context>
chip_gen: v7x
topology: tpu7x:2x2x1
jax: 0.10.0
libtpu: 0.0.40
codegen_flags: <defaults>
</compile_context>

<pallas_src>
import jax
import jax.numpy as jnp
from jax.experimental import pallas as pl
from jax.experimental.pallas import tpu as pltpu

LANE = 128
SUBLANE = 8


def _round_up(n, m):
    return ((n + m - 1) // m) * m


def surrogate_kernel(x_ref, w1_ref, b1_ref, w2_ref, b2_ref, w3_ref, b3_ref,
                     out_ref):
    # x_ref: (tb, num_inputs) tile of the (padded) batch.
    x = x_ref[...]

    # l1 + relu
    h1 = jnp.dot(x, w1_ref[...], preferred_element_type=jnp.float32)
    h1 = jnp.maximum(h1 + b1_ref[...], 0.0)          # (tb,H) + (1,H) broadcast

    # l2 + tanh
    h2 = jnp.dot(h1, w2_ref[...], preferred_element_type=jnp.float32)
    h2 = jnp.tanh(h2 + b2_ref[...])

    # l3 (output columns padded to a lane-dense width; padded cols are zero)
    y = jnp.dot(h2, w3_ref[...], preferred_element_type=jnp.float32)
    out_ref[...] = (y + b3_ref[...]).astype(out_ref.dtype)


def surrogate_forward(x, params, *, tb=None):
    """Run the Surrogate MLP forward pass with a Pallas kernel.

    x:      (B, num_inputs) float32
    params: dict with w1 (I,H), b1 (1,H), w2 (H,H), b2 (1,H),
                      w3 (H,O), b3 (1,O)  -- weights pre-transposed vs PyTorch.
    """
    B, num_inputs = x.shape
    O = params["w3"].shape[1]

    # --- lane-dense output: pad output feature dim up to a multiple of 128.
    O_pad = _round_up(O, LANE)
    w3, b3 = params["w3"], params["b3"]
    if O_pad != O:
        w3 = jnp.pad(w3, ((0, 0), (0, O_pad - O)))
        b3 = jnp.pad(b3, ((0, 0), (0, O_pad - O)))

    # --- batch tile: biggest tile that makes sense, few grid steps.
    if tb is None:
        tb = min(_round_up(B, SUBLANE), 1024)
    tb = max(SUBLANE, (tb // SUBLANE) * SUBLANE)
    B_pad = _round_up(B, tb)
    if B_pad != B:
        x = jnp.pad(x, ((0, B_pad - B), (0, 0)))

    grid = (B_pad // tb,)

    # Weights/biases: whole array resident in VMEM, no per-step pipelining.
    vmem_full = pl.BlockSpec(memory_space=pltpu.MemorySpace.VMEM)

    y_pad = pl.pallas_call(
        surrogate_kernel,
        out_shape=jax.ShapeDtypeStruct((B_pad, O_pad), jnp.float32),
        grid_spec=pltpu.PrefetchScalarGridSpec(
            num_scalar_prefetch=0,
            grid=grid,
            in_specs=[
                pl.BlockSpec((tb, num_inputs), lambda i: (i, 0)),  # x tile
                vmem_full,  # w1
                vmem_full,  # b1
                vmem_full,  # w2
                vmem_full,  # b2
                vmem_full,  # w3 (padded)
                vmem_full,  # b3 (padded)
            ],
            out_specs=pl.BlockSpec((tb, O_pad), lambda i: (i, 0)),
        ),
        compiler_params=pltpu.CompilerParams(
            dimension_semantics=("parallel",)),
    )(x, params["w1"], params["b1"], params["w2"], params["b2"], w3, b3)

    # Strip batch padding and the lane-padding of the output features.
    return y_pad[:B, :O]


def init_params(key, num_inputs, num_hidden, num_outputs):
    """Deterministic init mimicking nn.Linear (uniform(-1/sqrt(fan_in), +))."""
    ks = jax.random.split(key, 6)

    def linear(kw, kb, fan_in, fan_out):
        bound = 1.0 / jnp.sqrt(jnp.float32(fan_in))
        # stored as (in, out) == PyTorch weight.T
        w = jax.random.uniform(kw, (fan_in, fan_out), jnp.float32,
                               minval=-bound, maxval=bound)
        b = jax.random.uniform(kb, (1, fan_out), jnp.float32,
                               minval=-bound, maxval=bound)
        return w, b

    w1, b1 = linear(ks[0], ks[1], num_inputs, num_hidden)
    w2, b2 = linear(ks[2], ks[3], num_hidden, num_hidden)
    w3, b3 = linear(ks[4], ks[5], num_hidden, num_outputs)
    return {"w1": w1, "b1": b1, "w2": w2, "b2": b2, "w3": w3, "b3": b3}


def reference_forward(x, p):
    h1 = jnp.maximum(x @ p["w1"] + p["b1"], 0.0)
    h2 = jnp.tanh(h1 @ p["w2"] + p["b2"])
    return h2 @ p["w3"] + p["b3"]


if __name__ == "__main__":
    num_inputs, num_hidden, num_outputs = 16, 32, 1

    key = jax.random.PRNGKey(0)
    kx, kp = jax.random.split(key)
    params = init_params(kp, num_inputs, num_hidden, num_outputs)

    # Case 1: small batch -> whole batch in a single grid step.
    x1 = jax.random.normal(kx, (16, num_inputs), jnp.float32)
    y1 = jax.block_until_ready(surrogate_forward(x1, params))
    y1_ref = reference_forward(x1, params)
    assert y1.shape == (16, num_outputs)
    assert jnp.allclose(y1, y1_ref, atol=1e-5, rtol=1e-5), "mismatch (case 1)"

    # Case 2: batch not divisible by the tile -> padded multi-step grid.
    x2 = jax.random.normal(jax.random.PRNGKey(1), (300, num_inputs),
                           jnp.float32)
    y2 = jax.block_until_ready(surrogate_forward(x2, params, tb=128))
    y2_ref = reference_forward(x2, params)
    assert y2.shape == (300, num_outputs)
    assert jnp.allclose(y2, y2_ref, atol=1e-5, rtol=1e-5), "mismatch (case 2)"

    print("KERNEL_OK")
</pallas_src>

<mosaic_0001>
module attributes {stable_mosaic.version = 11 : i64} {
  func.func @surrogate_kernel(%arg0: i32, %arg1: memref<16x16xf32, #tpu.memory_space<vmem>>, %arg2: memref<16x32xf32, #tpu.memory_space<vmem>>, %arg3: memref<1x32xf32, #tpu.memory_space<vmem>>, %arg4: memref<32x32xf32, #tpu.memory_space<vmem>>, %arg5: memref<1x32xf32, #tpu.memory_space<vmem>>, %arg6: memref<32x128xf32, #tpu.memory_space<vmem>>, %arg7: memref<1x128xf32, #tpu.memory_space<vmem>>, %arg8: memref<16x128xf32, #tpu.memory_space<vmem>>) attributes {dimension_semantics = [#tpu.dimension_semantics<parallel>], iteration_bounds = array<i64: 1>, scalar_prefetch = 0 : i64, scratch_operands = 0 : i64, tpu.core_type = #tpu.core_type<tc>, window_params = [{transform_indices = @transform_0, window_bounds = array<i64: 16, 16>}, {pipeline_mode = #tpu.pipeline_mode<synchronous>, transform_indices = @transform_1, window_bounds = array<i64: 16, 32>}, {pipeline_mode = #tpu.pipeline_mode<synchronous>, transform_indices = @transform_2, window_bounds = array<i64: 1, 32>}, {pipeline_mode = #tpu.pipeline_mode<synchronous>, transform_indices = @transform_3, window_bounds = array<i64: 32, 32>}, {pipeline_mode = #tpu.pipeline_mode<synchronous>, transform_indices = @transform_4, window_bounds = array<i64: 1, 32>}, {pipeline_mode = #tpu.pipeline_mode<synchronous>, transform_indices = @transform_5, window_bounds = array<i64: 32, 128>}, {pipeline_mode = #tpu.pipeline_mode<synchronous>, transform_indices = @transform_6, window_bounds = array<i64: 1, 128>}, {transform_indices = @transform_7, window_bounds = array<i64: 16, 128>}]} {
    %c0 = arith.constant 0 : index
    %c0_0 = arith.constant 0 : index
    %0 = vector.load %arg1[%c0, %c0_0] : memref<16x16xf32, #tpu.memory_space<vmem>>, vector<16x16xf32>
    %c0_1 = arith.constant 0 : index
    %c0_2 = arith.constant 0 : index
    %1 = vector.load %arg2[%c0_1, %c0_2] : memref<16x32xf32, #tpu.memory_space<vmem>>, vector<16x32xf32>
    %cst = arith.constant dense<0.000000e+00> : vector<16x32xf32>
    %2 = tpu.matmul %0, %1, %cst {dimension_numbers = #tpu.dot_dimension_numbers<[1], [0], [0], [1], [0, 0, 1, 1], [], []>} : vector<16x16xf32>, vector<16x32xf32>, vector<16x32xf32> -> vector<16x32xf32>
    %c0_3 = arith.constant 0 : index
    %c0_4 = arith.constant 0 : index
    %3 = vector.load %arg3[%c0_3, %c0_4] : memref<1x32xf32, #tpu.memory_space<vmem>>, vector<1x32xf32>
    %4 = vector.broadcast %3 : vector<1x32xf32> to vector<16x32xf32>
    %5 = arith.addf %2, %4 : vector<16x32xf32>
    %cst_5 = arith.constant 0.000000e+00 : f32
    %6 = vector.broadcast %cst_5 : f32 to vector<16x32xf32>
    %7 = arith.maximumf %5, %6 : vector<16x32xf32>
    %c0_6 = arith.constant 0 : index
    %c0_7 = arith.constant 0 : index
    %8 = vector.load %arg4[%c0_6, %c0_7] : memref<32x32xf32, #tpu.memory_space<vmem>>, vector<32x32xf32>
    %cst_8 = arith.constant dense<0.000000e+00> : vector<16x32xf32>
    %9 = tpu.matmul %7, %8, %cst_8 {dimension_numbers = #tpu.dot_dimension_numbers<[1], [0], [0], [1], [0, 0, 1, 1], [], []>} : vector<16x32xf32>, vector<32x32xf32>, vector<16x32xf32> -> vector<16x32xf32>
    %c0_9 = arith.constant 0 : index
    %c0_10 = arith.constant 0 : index
    %10 = vector.load %arg5[%c0_9, %c0_10] : memref<1x32xf32, #tpu.memory_space<vmem>>, vector<1x32xf32>
    %11 = vector.broadcast %10 : vector<1x32xf32> to vector<16x32xf32>
    %12 = arith.addf %9, %11 : vector<16x32xf32>
    %13 = math.tanh %12 : vector<16x32xf32>
    %c0_11 = arith.constant 0 : index
    %c0_12 = arith.constant 0 : index
    %14 = vector.load %arg6[%c0_11, %c0_12] : memref<32x128xf32, #tpu.memory_space<vmem>>, vector<32x128xf32>
    %cst_13 = arith.constant dense<0.000000e+00> : vector<16x128xf32>
    %15 = tpu.matmul %13, %14, %cst_13 {dimension_numbers = #tpu.dot_dimension_numbers<[1], [0], [0], [1], [0, 0, 1, 1], [], []>} : vector<16x32xf32>, vector<32x128xf32>, vector<16x128xf32> -> vector<16x128xf32>
    %c0_14 = arith.constant 0 : index
    %c0_15 = arith.constant 0 : index
    %16 = vector.load %arg7[%c0_14, %c0_15] : memref<1x128xf32, #tpu.memory_space<vmem>>, vector<1x128xf32>
    %17 = vector.broadcast %16 : vector<1x128xf32> to vector<16x128xf32>
    %18 = arith.addf %15, %17 : vector<16x128xf32>
    %c0_16 = arith.constant 0 : index
    %c0_17 = arith.constant 0 : index
    %19 = vector.load %arg8[%c0_16, %c0_17] : memref<16x128xf32, #tpu.memory_space<vmem>>, vector<16x128xf32>
    tpu.vector_store %arg8[%c0_16, %c0_17], %18 {strides = array<i32>} : memref<16x128xf32, #tpu.memory_space<vmem>>, vector<16x128xf32>,
    return
  }
  func.func @transform_0(%arg0: i32) -> (i32, i32) {
    %c0_i32 = arith.constant 0 : i32
    %c0_i32_0 = arith.constant 0 : i32
    return %arg0, %c0_i32 : i32, i32
  }
  func.func @transform_1(%arg0: i32) -> (i32, i32) {
    %c0_i32 = arith.constant 0 : i32
    %c0_i32_0 = arith.constant 0 : i32
    %c0_i32_1 = arith.constant 0 : i32
    return %c0_i32, %c0_i32_0 : i32, i32
  }
  func.func @transform_2(%arg0: i32) -> (i32, i32) {
    %c0_i32 = arith.constant 0 : i32
    %c0_i32_0 = arith.constant 0 : i32
    %c0_i32_1 = arith.constant 0 : i32
    return %c0_i32, %c0_i32_0 : i32, i32
  }
  func.func @transform_3(%arg0: i32) -> (i32, i32) {
    %c0_i32 = arith.constant 0 : i32
    %c0_i32_0 = arith.constant 0 : i32
    %c0_i32_1 = arith.constant 0 : i32
    return %c0_i32, %c0_i32_0 : i32, i32
  }
  func.func @transform_4(%arg0: i32) -> (i32, i32) {
    %c0_i32 = arith.constant 0 : i32
    %c0_i32_0 = arith.constant 0 : i32
    %c0_i32_1 = arith.constant 0 : i32
    return %c0_i32, %c0_i32_0 : i32, i32
  }
  func.func @transform_5(%arg0: i32) -> (i32, i32) {
    %c0_i32 = arith.constant 0 : i32
    %c0_i32_0 = arith.constant 0 : i32
    %c0_i32_1 = arith.constant 0 : i32
    return %c0_i32, %c0_i32_0 : i32, i32
  }
  func.func @transform_6(%arg0: i32) -> (i32, i32) {
    %c0_i32 = arith.constant 0 : i32
    %c0_i32_0 = arith.constant 0 : i32
    %c0_i32_1 = arith.constant 0 : i32
    return %c0_i32, %c0_i32_0 : i32, i32
  }
  func.func @transform_7(%arg0: i32) -> (i32, i32) {
    %c0_i32 = arith.constant 0 : i32
    %c0_i32_0 = arith.constant 0 : i32
    return %arg0, %c0_i32 : i32, i32
  }
}

</mosaic_0001>

<llo_original>
// kernel: tpu_custom_call.1
$region0: #{tpu_custom_call.1}
  #allocation0 [shape = 'u32[]', space=smem, size = 0x4, offset = 0x4, fixed_abs, tag = 'smem constant byte address 0x4 - core index']
  #allocation1 [shape = 'u32[144,128]{1,0:T(1,128)}', space=vmem, size = 0x12000, scoped, tag = 'internal scratch']
  %s0 = inlined_call_operand.hbm [shape: f32[16,16], index: 0, kind: input, shape index: {}]
  %s1 = inlined_call_operand.hbm [shape: f32[16,32], index: 1, kind: input, shape index: {}]
  %s2 = inlined_call_operand.vmem [shape: f32[1,32], index: 2, kind: input, shape index: {}]
  %s3 = inlined_call_operand.hbm [shape: f32[32,32], index: 3, kind: input, shape index: {}]
  %s4 = inlined_call_operand.vmem [shape: f32[1,32], index: 4, kind: input, shape index: {}]
  %s5 = inlined_call_operand.hbm [shape: f32[32,128], index: 5, kind: input, shape index: {}]
  %s6 = inlined_call_operand.vmem [shape: f32[1,128], index: 6, kind: input, shape index: {}]
  %s7 = inlined_call_operand.hbm [shape: f32[16,128], index: 7, kind: output, shape index: {}]
  %s8 = sld [smem:[#allocation0]]
  $region54: #{tpu_custom_call.1} parent=0
    _
  %s10 = ssub.s32 1, %s8
  %s11 = scalar_select 0, %s10, %s8
  $region1: #{tpu_custom_call.1} parent=0
    #allocation2 [shape = 'u8[8192]{0}', space=vmem, size = 0x2000, scoped, tag = 'input window, operand 0, single buffered']
    #allocation3 [shape = 's32[1]{0}', space=sflag, size = 0x4, scoped, tag = 'scoped memory for tpu_custom_call.1']
    #allocation4 [shape = 's32[1]{0}', space=sflag, size = 0x4, scoped, tag = 'scoped memory for tpu_custom_call.1']
    #allocation5 [shape = 'u8[8192]{0}', space=vmem, size = 0x2000, scoped, tag = 'input window, operand 1, single buffered']
    #allocation6 [shape = 's32[1]{0}', space=sflag, size = 0x4, scoped, tag = 'scoped memory for tpu_custom_call.1']
    #allocation7 [shape = 'u8[16384]{0}', space=vmem, size = 0x4000, scoped, tag = 'input window, operand 3, single buffered']
    #allocation8 [shape = 'u8[16384]{0}', space=vmem, size = 0x4000, scoped, tag = 'input window, operand 5, single buffered']
    #allocation9 [shape = 's32[1]{0}', space=sflag, size = 0x4, scoped, tag = 'scoped memory for tpu_custom_call.1']
    #allocation10 [shape = 'u8[8192]{0}', space=vmem, size = 0x2000, scoped, tag = 'output window, operand 0, single buffered']
    %12 = vsyncpa [#allocation3], 0
    %13 = vsyncpa [#allocation6], 0
    %14 = vsyncpa [#allocation9], 0
    %15 = vsyncpa [#allocation4], 0
    // Predicated region
    $region2: #{tpu_custom_call.1} parent=1 // pred_check
      _
    $region3: #{tpu_custom_call.1} parent=1 // pred_check_branch
      %17 = sbr.rel (0) target = $region5
    $region4: #{tpu_custom_call.1} parent=1 // pred_region
      %s19 = ssub.s32 256, 256
      %20 = vsyncadd [#allocation3], %s19
      %s21 = sshll.u32 [#allocation2], 4
      %s22 = int_to_ptr.vmem [resolvable:$true] %s21
      %27 = dma.hbm_to_vmem [thread:$0]  %s0, 256, %s22, [#allocation3], 128, 128, 8
    $region5: #{tpu_custom_call.1} parent=1 // pred_fallthru
      _
    // Predicated region
    $region6: #{tpu_custom_call.1} parent=1 // pred_check
      _
    $region7: #{tpu_custom_call.1} parent=1 // pred_check_branch
      %29 = sbr.rel (0) target = $region9
    $region8: #{tpu_custom_call.1} parent=1 // pred_region
      %s31 = ssub.s32 256, 256
      %32 = vsyncadd [#allocation6], %s31
      %s33 = sshll.u32 [#allocation5], 4
      %s34 = int_to_ptr.vmem [resolvable:$true] %s33
      %39 = dma.hbm_to_vmem [thread:$0]  %s1, 256, %s34, [#allocation6], 128, 128, 8
    $region9: #{tpu_custom_call.1} parent=1 // pred_fallthru
      _
    // Predicated region
    $region10: #{tpu_custom_call.1} parent=1 // pred_check
      _
    $region11: #{tpu_custom_call.1} parent=1 // pred_check_branch
      %41 = sbr.rel (0) target = $region13
    $region12: #{tpu_custom_call.1} parent=1 // pred_region
      _
    $region13: #{tpu_custom_call.1} parent=1 // pred_fallthru
      _
    // Predicated region
    $region14: #{tpu_custom_call.1} parent=1 // pred_check
      _
    $region15: #{tpu_custom_call.1} parent=1 // pred_check_branch
      %43 = sbr.rel (0) target = $region17
    $region16: #{tpu_custom_call.1} parent=1 // pred_region
      %s45 = ssub.s32 512, 512
      %46 = vsyncadd [#allocation6], %s45
      %s47 = sshll.u32 [#allocation7], 4
      %s48 = int_to_ptr.vmem [resolvable:$true] %s47
      %53 = dma.hbm_to_vmem [thread:$0]  %s3, 512, %s48, [#allocation6], 128, 128, 8
    $region17: #{tpu_custom_call.1} parent=1 // pred_fallthru
      _
    // Predicated region
    $region18: #{tpu_custom_call.1} parent=1 // pred_check
      _
    $region19: #{tpu_custom_call.1} parent=1 // pred_check_branch
      %55 = sbr.rel (0) target = $region21
    $region20: #{tpu_custom_call.1} parent=1 // pred_region
      _
    $region21: #{tpu_custom_call.1} parent=1 // pred_fallthru
      _
    // Predicated region
    $region22: #{tpu_custom_call.1} parent=1 // pred_check
      _
    $region23: #{tpu_custom_call.1} parent=1 // pred_check_branch
      %57 = sbr.rel (0) target = $region25
    $region24: #{tpu_custom_call.1} parent=1 // pred_region
      %s59 = ssub.s32 512, 512
      %60 = vsyncadd [#allocation9], %s59
      %s61 = sshll.u32 [#allocation8], 4
      %s62 = int_to_ptr.vmem [resolvable:$true] %s61
      %67 = dma.hbm_to_vmem [thread:$0]  %s5, 512, %s62, [#allocation9], 128, 128, 8
    $region25: #{tpu_custom_call.1} parent=1 // pred_fallthru
      _
    // Predicated region
    $region26: #{tpu_custom_call.1} parent=1 // pred_check
      _
    $region27: #{tpu_custom_call.1} parent=1 // pred_check_branch
      %69 = sbr.rel (0) target = $region29
    $region28: #{tpu_custom_call.1} parent=1 // pred_region
      _
    $region29: #{tpu_custom_call.1} parent=1 // pred_fallthru
      _
    // Predicated region
    $region30: #{tpu_custom_call.1} parent=1 // pred_check
      _
    $region31: #{tpu_custom_call.1} parent=1 // pred_check_branch
      %71 = sbr.rel (0) target = $region33
    $region32: #{tpu_custom_call.1} parent=1 // pred_region
      %72 = dma.done [#allocation3], 256
    $region33: #{tpu_custom_call.1} parent=1 // pred_fallthru
      _
    // Predicated region
    $region34: #{tpu_custom_call.1} parent=1 // pred_check
      _
    $region35: #{tpu_custom_call.1} parent=1 // pred_check_branch
      %74 = sbr.rel (0) target = $region37
    $region36: #{tpu_custom_call.1} parent=1 // pred_region
      %75 = dma.done [#allocation6], 256
    $region37: #{tpu_custom_call.1} parent=1 // pred_fallthru
      _
    // Predicated region
    $region38: #{tpu_custom_call.1} parent=1 // pred_check
      _
    $region39: #{tpu_custom_call.1} parent=1 // pred_check_branch
      %77 = sbr.rel (0) target = $region41
    $region40: #{tpu_custom_call.1} parent=1 // pred_region
      %78 = dma.done [#allocation6], 512
    $region41: #{tpu_custom_call.1} parent=1 // pred_fallthru
      _
    // Predicated region
    $region42: #{tpu_custom_call.1} parent=1 // pred_check
      _
    $region43: #{tpu_custom_call.1} parent=1 // pred_check_branch
      %80 = sbr.rel (0) target = $region45
    $region44: #{tpu_custom_call.1} parent=1 // pred_region
      %81 = dma.done [#allocation9], 512
    $region45: #{tpu_custom_call.1} parent=1 // pred_fallthru
      _
    %v82 = vld [vmem:[#allocation2] sm:$0xff]
    %v83 = vld [vmem:[#allocation2 + $0x8] sm:$0xff]
    %v84 = vld [vmem:[#allocation5] sm:$0xff]
    %v85 = vld [vmem:[#allocation5 + $0x8] sm:$0xff]
    %v86 = vld [vmem:[%s2] sm:$0x1]
    %v88 = vlaneseq
    %v89 = vshrl.u32 %v88, 7
    %v90 = vsub.s32 0, %v89
    %v91 = vrot.slane %v86, %v90
    %vm93 = vcmask 130048
    %v95 = vsel %vm93, %v82, 0
    %v98 = vsel %vm93, %v83, 0
    %100 = vmatprep.subr.mxu0 0.0
    %101 = vmatpush1.msra.mxu0 %v84
    %102 = vmatprep.subr.mxu0 0.0
    %103 = vmatpush1.msra.mxu0 %v85
    %104 = vmatprep.subr.mxu0 0.0
    %105 = vmatpush1.msra.mxu0 0.0
    %106 = vmatprep.subr.mxu0 0.0
    %107 = vmatpush1.msra.mxu0 0.0
    %108 = vmatprep.subr.mxu0 0.0
    %109 = vmatpush1.msra.mxu0 0.0
    %110 = vmatprep.subr.mxu0 0.0
    %111 = vmatpush1.msra.mxu0 0.0
    %112 = vmatprep.subr.mxu0 0.0
    %113 = vmatpush1.msra.mxu0 0.0
    %114 = vmatprep.subr.mxu0 0.0
    %115 = vmatpush1.msra.mxu0 0.0
    %116 = vmatprep.subr.mxu0 0.0
    %117 = vmatpush1.msra.mxu0 0.0
    %118 = vmatprep.subr.mxu0 0.0
    %119 = vmatpush1.msra.mxu0 0.0
    %120 = vmatprep.subr.mxu0 0.0
    %121 = vmatpush1.msra.mxu0 0.0
    %122 = vmatprep.subr.mxu0 0.0
    %123 = vmatpush1.msra.mxu0 0.0
    %124 = vmatprep.subr.mxu0 0.0
    %125 = vmatpush1.msra.mxu0 0.0
    %126 = vmatprep.subr.mxu0 0.0
    %127 = vmatpush1.msra.mxu0 0.0
    %128 = vmatprep.subr.mxu0 0.0
    %129 = vmatpush1.msra.mxu0 0.0
    %130 = vmatprep.subr.mxu0 0.0
    %131 = vmatpush1.msra.mxu0 0.0
    %132 = vmatprep.subr.mxu0 0.0
    %133 = vmatpush1.msra.mxu0 0.0
    %134 = vmatprep.subr.mxu0 0.0
    %135 = vmatpush1.msra.mxu0 0.0
    %136 = vmatprep.subr.mxu0 0.0
    %137 = vmatpush1.msra.mxu0 0.0
    %138 = vmatprep.subr.mxu0 0.0
    %139 = vmatpush1.msra.mxu0 0.0
    %140 = vmatprep.subr.mxu0 0.0
    %141 = vmatpush1.msra.mxu0 0.0
    %142 = vmatprep.subr.mxu0 0.0
    %143 = vmatpush1.msra.mxu0 0.0
    %144 = vmatprep.subr.mxu0 0.0
    %145 = vmatpush1.msra.mxu0 0.0
    %146 = vmatprep.subr.mxu0 0.0
    %147 = vmatpush1.msra.mxu0 0.0
    %148 = vmatprep.subr.mxu0 0.0
    %149 = vmatpush1.msra.mxu0 0.0
    %150 = vmatprep.subr.mxu0 0.0
    %151 = vmatpush1.msra.mxu0 0.0
    %152 = vmatprep.subr.mxu0 0.0
    %153 = vmatpush1.msra.mxu0 0.0
    %154 = vmatprep.subr.mxu0 0.0
    %155 = vmatpush1.msra.mxu0 0.0
    %156 = vmatprep.subr.mxu0 0.0
    %157 = vmatpush1.msra.mxu0 0.0
    %158 = vmatprep.subr.mxu0 0.0
    %159 = vmatpush1.msra.mxu0 0.0
    %160 = vmatprep.subr.mxu0 0.0
    %161 = vmatpush1.msra.mxu0 0.0
    %162 = vmatprep.subr.mxu0 0.0
    %163 = vmatpush1.msra.mxu0 0.0
    %164 = vmatprep.mubr.f32.mxu0 0.0
    %165 = vmatmul.mubr.f32.gmra.mrb[0].mxu0 %v95
    %v166 = vpop.f32.mrb[0].mxu0
    %v167 = vadd.f32 %v91, %v166
    %v168 = vpop.f32.mrb[0].mxu0
    %169 = vmatprep.mubr.f32.mxu0 0.0
    %170 = vmatmul.mubr.f32.gmra.mrb[0].mxu0 %v98
    %v171 = vpop.f32.mrb[0].mxu0
    %v172 = vadd.f32 %v91, %v171
    %v173 = vpop.f32.mrb[0].mxu0
    %174 = vdwg.mxu0
    %v175 = vmax.f32 %v167, 0.0
    %v176 = vmax.f32 %v172, 0.0
    %v177 = vld [vmem:[#allocation7] sm:$0xff]
    %v178 = vld [vmem:[#allocation7 + $0x8] sm:$0xff]
    %v179 = vld [vmem:[#allocation7 + $0x10] sm:$0xff]
    %v180 = vld [vmem:[#allocation7 + $0x18] sm:$0xff]
    %v181 = vld [vmem:[%s4] sm:$0x1]
    %v183 = vlaneseq
    %v184 = vshrl.u32 %v183, 7
    %v185 = vsub.s32 0, %v184
    %v186 = vrot.slane %v181, %v185
    %vm188 = vcmask 261120
    %v190 = vsel %vm188, %v175, 0
    %v193 = vsel %vm188, %v176, 0
    %195 = vmatprep.subr.mxu0 0.0
    %196 = vmatpush1.msra.mxu0 %v177
    %197 = vmatprep.subr.mxu0 0.0
    %198 = vmatpush1.msra.mxu0 %v178
    %199 = vmatprep.subr.mxu0 0.0
    %200 = vmatpush1.msra.mxu0 %v179
    %201 = vmatprep.subr.mxu0 0.0
    %202 = vmatpush1.msra.mxu0 %v180
    %203 = vmatprep.subr.mxu0 0.0
    %204 = vmatpush1.msra.mxu0 0.0
    %205 = vmatprep.subr.mxu0 0.0
    %206 = vmatpush1.msra.mxu0 0.0
    %207 = vmatprep.subr.mxu0 0.0
    %208 = vmatpush1.msra.mxu0 0.0
    %209 = vmatprep.subr.mxu0 0.0
    %210 = vmatpush1.msra.mxu0 0.0
    %211 = vmatprep.subr.mxu0 0.0
    %212 = vmatpush1.msra.mxu0 0.0
    %213 = vmatprep.subr.mxu0 0.0
    %214 = vmatpush1.msra.mxu0 0.0
    %215 = vmatprep.subr.mxu0 0.0
    %216 = vmatpush1.msra.mxu0 0.0
    %217 = vmatprep.subr.mxu0 0.0
    %218 = vmatpush1.msra.mxu0 0.0
    %219 = vmatprep.subr.mxu0 0.0
    %220 = vmatpush1.msra.mxu0 0.0
    %221 = vmatprep.subr.mxu0 0.0
    %222 = vmatpush1.msra.mxu0 0.0
    %223 = vmatprep.subr.mxu0 0.0
    %224 = vmatpush1.msra.mxu0 0.0
    %225 = vmatprep.subr.mxu0 0.0
    %226 = vmatpush1.msra.mxu0 0.0
    %227 = vmatprep.subr.mxu0 0.0
    %228 = vmatpush1.msra.mxu0 0.0
    %229 = vmatprep.subr.mxu0 0.0
    %230 = vmatpush1.msra.mxu0 0.0
    %231 = vmatprep.subr.mxu0 0.0
    %232 = vmatpush1.msra.mxu0 0.0
    %233 = vmatprep.subr.mxu0 0.0
    %234 = vmatpush1.msra.mxu0 0.0
    %235 = vmatprep.subr.mxu0 0.0
    %236 = vmatpush1.msra.mxu0 0.0
    %237 = vmatprep.subr.mxu0 0.0
    %238 = vmatpush1.msra.mxu0 0.0
    %239 = vmatprep.subr.mxu0 0.0
    %240 = vmatpush1.msra.mxu0 0.0
    %241 = vmatprep.subr.mxu0 0.0
    %242 = vmatpush1.msra.mxu0 0.0
    %243 = vmatprep.subr.mxu0 0.0
    %244 = vmatpush1.msra.mxu0 0.0
    %245 = vmatprep.subr.mxu0 0.0
    %246 = vmatpush1.msra.mxu0 0.0
    %247 = vmatprep.subr.mxu0 0.0
    %248 = vmatpush1.msra.mxu0 0.0
    %249 = vmatprep.subr.mxu0 0.0
    %250 = vmatpush1.msra.mxu0 0.0
    %251 = vmatprep.subr.mxu0 0.0
    %252 = vmatpush1.msra.mxu0 0.0
    %253 = vmatprep.subr.mxu0 0.0
    %254 = vmatpush1.msra.mxu0 0.0
    %255 = vmatprep.subr.mxu0 0.0
    %256 = vmatpush1.msra.mxu0 0.0
    %257 = vmatprep.subr.mxu0 0.0
    %258 = vmatpush1.msra.mxu0 0.0
    %259 = vmatprep.mubr.f32.mxu0 0.0
    %260 = vmatmul.mubr.f32.gmra.mrb[0].mxu0 %v190
    %v261 = vpop.f32.mrb[0].mxu0
    %v262 = vadd.f32 %v186, %v261
    %v263 = vpop.f32.mrb[0].mxu0
    %264 = vmatprep.mubr.f32.mxu0 0.0
    %265 = vmatmul.mubr.f32.gmra.mrb[0].mxu0 %v193
    %v266 = vpop.f32.mrb[0].mxu0
    %v267 = vadd.f32 %v186, %v266
    %v268 = vpop.f32.mrb[0].mxu0
    %269 = vdwg.mxu0
    %v270 = vtanh.pop %v262
    %v271 = vtanh.pop %v267
    %v272 = vld [vmem:[#allocation8] sm:$0xff]
    %v273 = vld [vmem:[#allocation8 + $0x8] sm:$0xff]
    %v274 = vld [vmem:[#allocation8 + $0x10] sm:$0xff]
    %v275 = vld [vmem:[#allocation8 + $0x18] sm:$0xff]
    %v276 = vld [vmem:[%s6] sm:$0x1]
    %v278 = vlaneseq
    %v279 = vshrl.u32 %v278, 7
    %v280 = vsub.s32 0, %v279
    %v281 = vrot.slane %v276, %v280
    %v284 = vsel %vm188, %v270, 0
    %v287 = vsel %vm188, %v271, 0
    %289 = vmatprep.subr.mxu0 0.0
    %290 = vmatpush1.msra.mxu0 %v272
    %291 = vmatprep.subr.mxu0 0.0
    %292 = vmatpush1.msra.mxu0 %v273
    %293 = vmatprep.subr.mxu0 0.0
    %294 = vmatpush1.msra.mxu0 %v274
    %295 = vmatprep.subr.mxu0 0.0
    %296 = vmatpush1.msra.mxu0 %v275
    %297 = vmatprep.subr.mxu0 0.0
    %298 = vmatpush1.msra.mxu0 0.0
    %299 = vmatprep.subr.mxu0 0.0
    %300 = vmatpush1.msra.mxu0 0.0
    %301 = vmatprep.subr.mxu0 0.0
    %302 = vmatpush1.msra.mxu0 0.0
    %303 = vmatprep.subr.mxu0 0.0
    %304 = vmatpush1.msra.mxu0 0.0
    %305 = vmatprep.subr.mxu0 0.0
    %306 = vmatpush1.msra.mxu0 0.0
    %307 = vmatprep.subr.mxu0 0.0
    %308 = vmatpush1.msra.mxu0 0.0
    %309 = vmatprep.subr.mxu0 0.0
    %310 = vmatpush1.msra.mxu0 0.0
    %311 = vmatprep.subr.mxu0 0.0
    %312 = vmatpush1.msra.mxu0 0.0
    %313 = vmatprep.subr.mxu0 0.0
    %314 = vmatpush1.msra.mxu0 0.0
    %315 = vmatprep.subr.mxu0 0.0
    %316 = vmatpush1.msra.mxu0 0.0
    %317 = vmatprep.subr.mxu0 0.0
    %318 = vmatpush1.msra.mxu0 0.0
    %319 = vmatprep.subr.mxu0 0.0
    %320 = vmatpush1.msra.mxu0 0.0
    %321 = vmatprep.subr.mxu0 0.0
    %322 = vmatpush1.msra.mxu0 0.0
    %323 = vmatprep.subr.mxu0 0.0
    %324 = vmatpush1.msra.mxu0 0.0
    %325 = vmatprep.subr.mxu0 0.0
    %326 = vmatpush1.msra.mxu0 0.0
    %327 = vmatprep.subr.mxu0 0.0
    %328 = vmatpush1.msra.mxu0 0.0
    %329 = vmatprep.subr.mxu0 0.0
    %330 = vmatpush1.msra.mxu0 0.0
    %331 = vmatprep.subr.mxu0 0.0
    %332 = vmatpush1.msra.mxu0 0.0
    %333 = vmatprep.subr.mxu0 0.0
    %334 = vmatpush1.msra.mxu0 0.0
    %335 = vmatprep.subr.mxu0 0.0
    %336 = vmatpush1.msra.mxu0 0.0
    %337 = vmatprep.subr.mxu0 0.0
    %338 = vmatpush1.msra.mxu0 0.0
    %339 = vmatprep.subr.mxu0 0.0
    %340 = vmatpush1.msra.mxu0 0.0
    %341 = vmatprep.subr.mxu0 0.0
    %342 = vmatpush1.msra.mxu0 0.0
    %343 = vmatprep.subr.mxu0 0.0
    %344 = vmatpush1.msra.mxu0 0.0
    %345 = vmatprep.subr.mxu0 0.0
    %346 = vmatpush1.msra.mxu0 0.0
    %347 = vmatprep.subr.mxu0 0.0
    %348 = vmatpush1.msra.mxu0 0.0
    %349 = vmatprep.subr.mxu0 0.0
    %350 = vmatpush1.msra.mxu0 0.0
    %351 = vmatprep.subr.mxu0 0.0
    %352 = vmatpush1.msra.mxu0 0.0
    %353 = vmatprep.mubr.f32.mxu0 0.0
    %354 = vmatmul.mubr.f32.gmra.mrb[0].mxu0 %v284
    %v355 = vpop.f32.mrb[0].mxu0
    %v356 = vadd.f32 %v281, %v355
    %v357 = vpop.f32.mrb[0].mxu0
    %358 = vmatprep.mubr.f32.mxu0 0.0
    %359 = vmatmul.mubr.f32.gmra.mrb[0].mxu0 %v287
    %v360 = vpop.f32.mrb[0].mxu0
    %v361 = vadd.f32 %v281, %v360
    %v362 = vpop.f32.mrb[0].mxu0
    %363 = vdwg.mxu0
    %364 = vst [vmem:[#allocation10] sm:$0xff] %v356
    %365 = vst [vmem:[#allocation10 + $0x8] sm:$0xff] %v361
    // Predicated region
    $region46: #{tpu_custom_call.1} parent=1 // pred_check
      _
    $region47: #{tpu_custom_call.1} parent=1 // pred_check_branch
      %367 = sbr.rel (0) target = $region49
    $region48: #{tpu_custom_call.1} parent=1 // pred_region
      %s369 = ssub.s32 256, 256
      %370 = vsyncadd [#allocation4], %s369
      %s371 = sshll.u32 [#allocation10], 4
      %s372 = int_to_ptr.vmem [resolvable:$true] %s371
      %377 = dma.vmem_to_hbm [thread:$0]  %s372, 256, %s7, [#allocation4], 128, 128, 8
    $region49: #{tpu_custom_call.1} parent=1 // pred_fallthru
      _
    // Predicated region
    $region50: #{tpu_custom_call.1} parent=1 // pred_check
      _
    $region51: #{tpu_custom_call.1} parent=1 // pred_check_branch
      %379 = sbr.rel (0) target = $region53
    $region52: #{tpu_custom_call.1} parent=1 // pred_region
      %380 = dma.done [#allocation4], 256
    $region53: #{tpu_custom_call.1} parent=1 // pred_fallthru
      _
    %381 = vsyncpa [#allocation3], 1
    %382 = vsyncpa [#allocation6], 1
    %383 = vsyncpa [#allocation9], 1
    %384 = vsyncpa [#allocation4], 1

</llo_original>
